<compile_context>
chip_gen: v6e
topology: v6e:2x2x1
jax: 0.10.0
libtpu: 0.0.40
codegen_flags: <defaults>
</compile_context>

<pallas_src>
import math

import jax
import jax.numpy as jnp
from jax.experimental import pallas as pl
from jax.experimental.pallas import tpu as pltpu

_LANE = 128
_TARGET_BLOCK_BYTES = 4 * 1024 * 1024   # per-operand block target
_VMEM_LIMIT_BYTES = 32 * 1024 * 1024    # 3 ops x 2 bufs x 4 MiB = 24 MiB + headroom


def _add_kernel(x_ref, y_ref, o_ref):
    # In-kernel promotion + broadcast: operands keep their native dtypes,
    # a (1,1) y-block broadcasts in-vreg, final cast targets the output dtype.
    o_ref[...] = (x_ref[...] + y_ref[...]).astype(o_ref.dtype)


def _sublane_multiple(*dtypes):
    # Sub-32-bit dtypes pack along sublanes: f32 -> 8, bf16 -> 16, int8/fp8 -> 32.
    m = 8
    for dt in dtypes:
        m = max(m, 32 // max(1, jnp.dtype(dt).itemsize))
    return m


def _choose_cols(total, sub):
    # Widest lane-dense column count (multiple of 128) dividing `total` such
    # that the resulting row count is sublane-aligned (full vregs, unmasked
    # loads/stores). Fall back to any divisor if none qualifies.
    for c in (4096, 2048, 1024, 512, 256, 128):
        if total % c == 0 and (total // c) % sub == 0:
            return c
    for c in (4096, 2048, 1024, 512, 256, 128):
        if total % c == 0:
            return c
    return None


def _tiled_add_2d(big2, small2, out_dtype, small_is_scalar):
    rows, cols = big2.shape
    sub = _sublane_multiple(big2.dtype, small2.dtype, out_dtype)
    itemsize = jnp.dtype(out_dtype).itemsize

    target_rows = max(sub, (_TARGET_BLOCK_BYTES // (cols * itemsize)) // sub * sub)
    if rows <= 2 * sub:
        tile_rows = rows  # tiny array: single full-extent block
    else:
        # Cap at ~rows/2 (sublane-aligned, < rows) so the "parallel" grid has
        # at least 2 steps and v7x can shard them across its two TensorCores.
        half = ((rows + 1) // 2 + sub - 1) // sub * sub
        tile_rows = min(target_rows, max(sub, half))

    grid = (pl.cdiv(rows, tile_rows),)

    big_spec = pl.BlockSpec((tile_rows, cols), lambda i: (i, 0))
    if small_is_scalar:
        small_spec = pl.BlockSpec((1, 1), lambda i: (0, 0))
    else:
        small_spec = pl.BlockSpec((tile_rows, cols), lambda i: (i, 0))
    out_spec = pl.BlockSpec((tile_rows, cols), lambda i: (i, 0))

    return pl.pallas_call(
        _add_kernel,
        out_shape=jax.ShapeDtypeStruct((rows, cols), out_dtype),
        grid_spec=pl.GridSpec(
            grid=grid,
            in_specs=[big_spec, small_spec],
            out_specs=out_spec,
        ),
        compiler_params=pltpu.CompilerParams(
            dimension_semantics=("parallel",),
            vmem_limit_bytes=_VMEM_LIMIT_BYTES,
        ),
    )(big2, small2)


def pallas_add(x, y):
    """TestAddModel.forward: z = x + y via a Pallas TPU kernel."""
    x = jnp.asarray(x)
    y = jnp.asarray(y)
    out_shape = jnp.broadcast_shapes(x.shape, y.shape)
    dtype = jnp.result_type(x.dtype, y.dtype)

    total = math.prod(out_shape) if out_shape else 1
    if total == 0:
        return jnp.zeros(out_shape, dtype)

    x_size = math.prod(x.shape) if x.shape else 1
    y_size = math.prod(y.shape) if y.shape else 1

    # Degenerate: both operands have a single element.
    if x_size == 1 and y_size == 1:
        return (x + y).astype(dtype)

    def _prep(a, a_size):
        if a_size == total:
            # No replication needed: flat order already matches the output.
            return a.reshape(-1), False
        if a_size == 1:
            # Scalar broadcast handled inside the kernel via a (1,1) block.
            return a.reshape(1, 1), True
        # TODO(synk): partial (non-scalar, non-full) broadcasts are still
        # materialized in the wrapper; an ND-blocked kernel could avoid this.
        return jnp.broadcast_to(a, out_shape).reshape(-1), False

    xf, x_scalar = _prep(x, x_size)
    yf, y_scalar = _prep(y, y_size)

    # Addition is commutative and promotion is symmetric: put the big operand
    # first; `small` is either a full flat array or a (1,1) scalar block.
    if x_scalar:
        big, small, small_is_scalar = yf, xf, True
    elif y_scalar:
        big, small, small_is_scalar = xf, yf, True
    else:
        big, small, small_is_scalar = xf, yf, False

    sub = _sublane_multiple(x.dtype, y.dtype, dtype)
    main = (total // _LANE) * _LANE
    tail = total - main

    if tail == 0:
        # Aligned fast path: pure reshapes only (no wrapper HBM copies).
        cols = _choose_cols(total, sub)
        rows = total // cols
        big2 = big.reshape(rows, cols)
        small2 = small if small_is_scalar else small.reshape(rows, cols)
        out2 = _tiled_add_2d(big2, small2, dtype, small_is_scalar)
        return out2.reshape(out_shape)

    if main == 0:
        # Fewer than 128 elements total: plain jnp add is cheapest.
        return (x + y).astype(dtype)

    # Unaligned: kernel on the 128-aligned prefix + tiny (<128 elem) jnp tail.
    cols = _choose_cols(main, sub)
    rows = main // cols
    big_main = big[:main].reshape(rows, cols)
    if small_is_scalar:
        small_main = small
        tail_out = (big[main:] + small.reshape(())).astype(dtype)
    else:
        small_main = small[:main].reshape(rows, cols)
        tail_out = (big[main:] + small[main:]).astype(dtype)
    out_main = _tiled_add_2d(big_main, small_main, dtype, small_is_scalar)
    flat = jnp.concatenate([out_main.reshape(-1), tail_out])
    return flat.reshape(out_shape)


if __name__ == "__main__":
    key = jax.random.PRNGKey(0)
    kx, ky = jax.random.split(key)
    # Small NCHW-style shapes consistent with the module's forward.
    x = jax.random.normal(kx, (2, 4, 16, 16), dtype=jnp.float32)
    y = jax.random.normal(ky, (2, 4, 16, 16), dtype=jnp.float32)

    z = pallas_add(x, y)
    jax.block_until_ready(z)

    expected = x + y
    assert z.shape == expected.shape
    assert z.dtype == expected.dtype
    assert jnp.allclose(z, expected, atol=1e-6, rtol=1e-6)
    print("KERNEL_OK")
</pallas_src>

<mosaic_0001>
module attributes {stable_mosaic.version = 11 : i64} {
  func.func @_add_kernel(%arg0: i32, %arg1: memref<8x256xf32, #tpu.memory_space<vmem>>, %arg2: memref<8x256xf32, #tpu.memory_space<vmem>>, %arg3: memref<8x256xf32, #tpu.memory_space<vmem>>) attributes {dimension_semantics = [#tpu.dimension_semantics<parallel>], iteration_bounds = array<i64: 1>, scalar_prefetch = 0 : i64, scratch_operands = 0 : i64, tpu.core_type = #tpu.core_type<tc>, window_params = [{transform_indices = @transform_0, window_bounds = array<i64: 8, 256>}, {transform_indices = @transform_1, window_bounds = array<i64: 8, 256>}, {transform_indices = @transform_2, window_bounds = array<i64: 8, 256>}]} {
    %c0 = arith.constant 0 : index
    %c0_0 = arith.constant 0 : index
    %0 = vector.load %arg1[%c0, %c0_0] : memref<8x256xf32, #tpu.memory_space<vmem>>, vector<8x256xf32>
    %c0_1 = arith.constant 0 : index
    %c0_2 = arith.constant 0 : index
    %1 = vector.load %arg2[%c0_1, %c0_2] : memref<8x256xf32, #tpu.memory_space<vmem>>, vector<8x256xf32>
    %2 = arith.addf %0, %1 : vector<8x256xf32>
    %c0_3 = arith.constant 0 : index
    %c0_4 = arith.constant 0 : index
    %3 = vector.load %arg3[%c0_3, %c0_4] : memref<8x256xf32, #tpu.memory_space<vmem>>, vector<8x256xf32>
    tpu.vector_store %arg3[%c0_3, %c0_4], %2 {strides = array<i32>} : memref<8x256xf32, #tpu.memory_space<vmem>>, vector<8x256xf32>,
    return
  }
  func.func @transform_0(%arg0: i32) -> (i32, i32) {
    %c0_i32 = arith.constant 0 : i32
    %c0_i32_0 = arith.constant 0 : i32
    return %arg0, %c0_i32 : i32, i32
  }
  func.func @transform_1(%arg0: i32) -> (i32, i32) {
    %c0_i32 = arith.constant 0 : i32
    %c0_i32_0 = arith.constant 0 : i32
    return %arg0, %c0_i32 : i32, i32
  }
  func.func @transform_2(%arg0: i32) -> (i32, i32) {
    %c0_i32 = arith.constant 0 : i32
    %c0_i32_0 = arith.constant 0 : i32
    return %arg0, %c0_i32 : i32, i32
  }
}

</mosaic_0001>

<llo_original>
// kernel: tpu_custom_call.1
$region0: #{tpu_custom_call.1}
  #allocation0 [shape = 'u32[]', space=smem, size = 0x4, offset = 0x4, fixed_abs, tag = 'smem constant byte address 0x4 - core index']
  #allocation1 [shape = 'u32[144,128]{1,0:T(1,128)}', space=vmem, size = 0x12000, scoped, tag = 'internal scratch']
  %s0 = inlined_call_operand.hbm [shape: f32[8,256], index: 0, kind: input, shape index: {}]
  %s1 = inlined_call_operand.hbm [shape: f32[8,256], index: 1, kind: input, shape index: {}]
  %s2 = inlined_call_operand.hbm [shape: f32[8,256], index: 2, kind: output, shape index: {}]
  %s3 = sld [smem:[#allocation0]]
  $region26: #{tpu_custom_call.1} parent=0
    _
  %s5 = ssub.s32 1, %s3
  %s6 = scalar_select 0, %s5, %s3
  $region1: #{tpu_custom_call.1} parent=0
    #allocation2 [shape = 'u8[8192]{0}', space=vmem, size = 0x2000, scoped, tag = 'input window, operand 0, single buffered']
    #allocation3 [shape = 's32[1]{0}', space=sflag, size = 0x4, scoped, tag = 'scoped memory for tpu_custom_call.1']
    #allocation4 [shape = 's32[1]{0}', space=sflag, size = 0x4, scoped, tag = 'scoped memory for tpu_custom_call.1']
    #allocation5 [shape = 'u8[8192]{0}', space=vmem, size = 0x2000, scoped, tag = 'input window, operand 1, single buffered']
    #allocation6 [shape = 's32[1]{0}', space=sflag, size = 0x4, scoped, tag = 'scoped memory for tpu_custom_call.1']
    #allocation7 [shape = 'u8[8192]{0}', space=vmem, size = 0x2000, scoped, tag = 'output window, operand 0, single buffered']
    %7 = vsyncpa [#allocation3], 0
    %8 = vsyncpa [#allocation6], 0
    %9 = vsyncpa [#allocation4], 0
    // Predicated region
    $region2: #{tpu_custom_call.1} parent=1 // pred_check
      _
    $region3: #{tpu_custom_call.1} parent=1 // pred_check_branch
      %11 = sbr.rel (0) target = $region5
    $region4: #{tpu_custom_call.1} parent=1 // pred_region
      %s13 = ssub.s32 256, 256
      %14 = vsyncadd [#allocation3], %s13
      %s16 = sshll.u32 [#allocation2], 4
      %s17 = int_to_ptr.vmem [resolvable:$true] %s16
      %19 = dma.hbm_to_vmem [thread:$0]  %s0, 256, %s17, [#allocation3]
    $region5: #{tpu_custom_call.1} parent=1 // pred_fallthru
      _
    // Predicated region
    $region6: #{tpu_custom_call.1} parent=1 // pred_check
      _
    $region7: #{tpu_custom_call.1} parent=1 // pred_check_branch
      %21 = sbr.rel (0) target = $region9
    $region8: #{tpu_custom_call.1} parent=1 // pred_region
      %s23 = ssub.s32 256, 256
      %24 = vsyncadd [#allocation6], %s23
      %s26 = sshll.u32 [#allocation5], 4
      %s27 = int_to_ptr.vmem [resolvable:$true] %s26
      %29 = dma.hbm_to_vmem [thread:$0]  %s1, 256, %s27, [#allocation6]
    $region9: #{tpu_custom_call.1} parent=1 // pred_fallthru
      _
    // Predicated region
    $region10: #{tpu_custom_call.1} parent=1 // pred_check
      _
    $region11: #{tpu_custom_call.1} parent=1 // pred_check_branch
      %31 = sbr.rel (0) target = $region13
    $region12: #{tpu_custom_call.1} parent=1 // pred_region
      %32 = dma.done [#allocation3], 256
    $region13: #{tpu_custom_call.1} parent=1 // pred_fallthru
      _
    // Predicated region
    $region14: #{tpu_custom_call.1} parent=1 // pred_check
      _
    $region15: #{tpu_custom_call.1} parent=1 // pred_check_branch
      %34 = sbr.rel (0) target = $region17
    $region16: #{tpu_custom_call.1} parent=1 // pred_region
      %35 = dma.done [#allocation6], 256
    $region17: #{tpu_custom_call.1} parent=1 // pred_fallthru
      _
    %v36 = vld [vmem:[#allocation2] sm:$0xff]
    %v37 = vld [vmem:[#allocation2 + $0x8] sm:$0xff]
    %v38 = vld [vmem:[#allocation5] sm:$0xff]
    %v39 = vld [vmem:[#allocation5 + $0x8] sm:$0xff]
    %v40 = vadd.f32 %v36, %v38
    %v41 = vadd.f32 %v37, %v39
    %42 = vst [vmem:[#allocation7] sm:$0xff] %v40
    %43 = vst [vmem:[#allocation7 + $0x8] sm:$0xff] %v41
    // Predicated region
    $region18: #{tpu_custom_call.1} parent=1 // pred_check
      _
    $region19: #{tpu_custom_call.1} parent=1 // pred_check_branch
      %45 = sbr.rel (0) target = $region21
    $region20: #{tpu_custom_call.1} parent=1 // pred_region
      %s47 = ssub.s32 256, 256
      %48 = vsyncadd [#allocation4], %s47
      %s50 = sshll.u32 [#allocation7], 4
      %s51 = int_to_ptr.vmem [resolvable:$true] %s50
      %53 = dma.vmem_to_hbm [thread:$0]  %s51, 256, %s2, [#allocation4]
    $region21: #{tpu_custom_call.1} parent=1 // pred_fallthru
      _
    // Predicated region
    $region22: #{tpu_custom_call.1} parent=1 // pred_check
      _
    $region23: #{tpu_custom_call.1} parent=1 // pred_check_branch
      %55 = sbr.rel (0) target = $region25
    $region24: #{tpu_custom_call.1} parent=1 // pred_region
      %56 = dma.done [#allocation4], 256
    $region25: #{tpu_custom_call.1} parent=1 // pred_fallthru
      _
    %57 = vsyncpa [#allocation3], 1
    %58 = vsyncpa [#allocation6], 1
    %59 = vsyncpa [#allocation4], 1

</llo_original>
